<compile_context>
chip_gen: v7x
topology: tpu7x:2x2x1
jax: 0.10.0
libtpu: 0.0.40
codegen_flags: <defaults>
</compile_context>

<pallas_src>
import functools

import jax
import jax.numpy as jnp
from jax.experimental import pallas as pl
from jax.experimental.pallas import tpu as pltpu


def _round_up(x, m):
    return ((x + m - 1) // m) * m


def _pick_tk(d_in_padded, cap=2048):
    """Largest multiple of 128 that divides d_in_padded and is <= cap."""
    best = 128
    t = 128
    while t <= min(d_in_padded, cap):
        if d_in_padded % t == 0:
            best = t
        t += 128
    return best


# -----------------------------------------------------------------------------
# Pallas kernel: fused MLP feature extractor + (concatenated) predictor heads
# -----------------------------------------------------------------------------
def _box_head_mlp_kernel(
    x_ref,      # (TM, TK)        bf16 pooled ROI feature tile (K-chunk of D_in)
    w6_ref,     # (TK, H_pad)     bf16 fc6 weight chunk
    b6_ref,     # (1, H_pad)      f32  fc6 bias
    w7_ref,     # (H_pad, H_pad)  bf16 fc7 weight (resident)
    b7_ref,     # (1, H_pad)      f32  fc7 bias
    wp_ref,     # (H_pad, P_pad)  bf16 concat(cls_score, bbox_pred) weight (resident)
    bp_ref,     # (1, P_pad)      f32  concat bias
    feat_ref,   # out (TM, H_pad) f32  feature-extractor output "x"
    pred_ref,   # out (TM, P_pad) f32  concat(class_logits, box_regression)
    acc_ref,    # scratch (TM, H_pad) f32 fc6 accumulator
):
    k = pl.program_id(1)

    @pl.when(k == 0)
    def _():
        # Fold the fc6 bias into the f32 accumulator initialization.
        acc_ref[...] = jnp.broadcast_to(b6_ref[...], acc_ref.shape)

    # fc6 partial product for this K chunk (bf16 x bf16 -> f32 on the MXU).
    acc_ref[...] += jnp.dot(x_ref[...], w6_ref[...],
                            preferred_element_type=jnp.float32)

    @pl.when(k == pl.num_programs(1) - 1)
    def _():
        h6 = jnp.maximum(acc_ref[...], 0.0).astype(jnp.bfloat16)          # ReLU(fc6)
        h7 = jnp.dot(h6, w7_ref[...],
                     preferred_element_type=jnp.float32) + b7_ref[...]    # fc7
        h7 = jnp.maximum(h7, 0.0)                                         # ReLU
        feat_ref[...] = h7.astype(feat_ref.dtype)
        # Single lane-dense matmul for cls_score + bbox_pred.
        pred_ref[...] = (jnp.dot(h7.astype(jnp.bfloat16), wp_ref[...],
                                 preferred_element_type=jnp.float32)
                         + bp_ref[...]).astype(pred_ref.dtype)


def box_head_mlp(pooled_flat, params, *, tm=128):
    """pooled_flat: (N, D_in) f32. Returns (feat (N, H_pad) f32, pred (N, P_pad) f32)."""
    n, d_in = pooled_flat.shape
    d_in_p, h_p = params["w6"].shape
    p_p = params["wp"].shape[1]

    n_pad = _round_up(max(n, 1), tm)
    tk = _pick_tk(d_in_p)

    x = jnp.pad(pooled_flat,
                ((0, n_pad - n), (0, d_in_p - d_in))).astype(jnp.bfloat16)

    grid = (n_pad // tm, d_in_p // tk)

    feat_p, pred_p = pl.pallas_call(
        _box_head_mlp_kernel,
        out_shape=(
            jax.ShapeDtypeStruct((n_pad, h_p), jnp.float32),
            jax.ShapeDtypeStruct((n_pad, p_p), jnp.float32),
        ),
        grid_spec=pltpu.PrefetchScalarGridSpec(
            num_scalar_prefetch=0,
            grid=grid,
            in_specs=[
                pl.BlockSpec((tm, tk), lambda i, k: (i, k)),        # x tile
                pl.BlockSpec((tk, h_p), lambda i, k: (k, 0)),       # fc6 weight chunk
                pl.BlockSpec((1, h_p), lambda i, k: (0, 0)),        # fc6 bias (resident)
                pl.BlockSpec((h_p, h_p), lambda i, k: (0, 0)),      # fc7 weight (resident)
                pl.BlockSpec((1, h_p), lambda i, k: (0, 0)),        # fc7 bias (resident)
                pl.BlockSpec((h_p, p_p), lambda i, k: (0, 0)),      # predictor weight (resident)
                pl.BlockSpec((1, p_p), lambda i, k: (0, 0)),        # predictor bias (resident)
            ],
            out_specs=[
                pl.BlockSpec((tm, h_p), lambda i, k: (i, 0)),       # feat
                pl.BlockSpec((tm, p_p), lambda i, k: (i, 0)),       # concat logits/regression
            ],
            scratch_shapes=[pltpu.VMEM((tm, h_p), jnp.float32)],
        ),
        compiler_params=pltpu.CompilerParams(
            dimension_semantics=("parallel", "arbitrary"),
            vmem_limit_bytes=64 * 1024 * 1024,
        ),
    )(x, params["w6"], params["b6"], params["w7"], params["b7"],
      params["wp"], params["bp"])

    return feat_p[:n], pred_p[:n]


# -----------------------------------------------------------------------------
# Plain-JAX glue: ROIAlign (data-dependent gather + bilinear interpolation)
# -----------------------------------------------------------------------------
def roi_align(feature, rois, resolution, spatial_scale, sampling_ratio=2):
    """feature: (C, H, W) f32, rois: (N, 4) [x1,y1,x2,y2] image coords -> (N, C, P, P).

    Matches maskrcnn_benchmark semantics: out-of-range samples ([-1, dim] test) are
    zeroed, sample coordinates are clamped BEFORE computing bilinear weights, and
    sampling_ratio x sampling_ratio samples are averaged per output bin.
    """
    c, h, w = feature.shape
    feat_hw_c = jnp.transpose(feature.reshape(c, h * w))   # (H*W, C) single-axis gather
    s = resolution * sampling_ratio

    def one_roi(box):
        x1, y1, x2, y2 = box * spatial_scale
        rw = jnp.maximum(x2 - x1, 1.0)
        rh = jnp.maximum(y2 - y1, 1.0)
        bw = rw / resolution
        bh = rh / resolution

        idx = jnp.arange(s, dtype=jnp.float32)
        sx = x1 + (idx + 0.5) * (bw / sampling_ratio)   # (S,)
        sy = y1 + (idx + 0.5) * (bh / sampling_ratio)   # (S,)
        gx, gy = jnp.meshgrid(sx, sy, indexing="xy")    # (S, S); row = y, col = x

        valid = ((gx >= -1.0) & (gx <= w) & (gy >= -1.0) & (gy <= h))

        gxc = jnp.clip(gx, 0.0, w - 1.0)
        gyc = jnp.clip(gy, 0.0, h - 1.0)
        x0 = jnp.floor(gxc)
        y0 = jnp.floor(gyc)
        lx = gxc - x0
        ly = gyc - y0
        x0i = x0.astype(jnp.int32)
        y0i = y0.astype(jnp.int32)
        x1i = jnp.minimum(x0i + 1, w - 1)
        y1i = jnp.minimum(y0i + 1, h - 1)

        def gather(yi, xi):
            flat = (yi * w + xi).reshape(-1)
            return jnp.take(feat_hw_c, flat, axis=0).reshape(s, s, c)

        f00 = gather(y0i, x0i)
        f01 = gather(y0i, x1i)
        f10 = gather(y1i, x0i)
        f11 = gather(y1i, x1i)

        wy0 = (1.0 - ly)[..., None]
        wy1 = ly[..., None]
        wx0 = (1.0 - lx)[..., None]
        wx1 = lx[..., None]
        val = f00 * wy0 * wx0 + f01 * wy0 * wx1 + f10 * wy1 * wx0 + f11 * wy1 * wx1
        val = val * valid[..., None].astype(val.dtype)

        # average samples within each bin: (S,S,C) -> (P,P,C) -> (C,P,P)
        val = val.reshape(resolution, sampling_ratio, resolution, sampling_ratio, c)
        val = val.mean(axis=(1, 3))
        return jnp.transpose(val, (2, 0, 1))

    # TODO(synk): adaptive sampling_ratio (ceil(roi_size/P)) and fusing this gather into
    # the Pallas kernel (scalar-prefetched corner indices) are left as glue.
    return jax.vmap(one_roi)(rois)   # (N, C, P, P)


# -----------------------------------------------------------------------------
# Parameters (pre-padded / pre-cast once, outside the hot path)
# -----------------------------------------------------------------------------
def make_params(key, in_channels, resolution, hidden, num_classes):
    d_in = in_channels * resolution * resolution
    nreg = 5 * num_classes                      # rotated boxes: (dx,dy,dw,dh,dtheta)/class
    d_in_p = _round_up(d_in, 128)
    h_p = _round_up(hidden, 128)
    p_p = _round_up(num_classes + nreg, 128)

    ks = jax.random.split(key, 4)

    def init(k, shape, scale):
        return jax.random.normal(k, shape, dtype=jnp.float32) * scale

    w6 = init(ks[0], (d_in, hidden), 0.02)
    w7 = init(ks[1], (hidden, hidden), 0.02)
    wc = init(ks[2], (hidden, num_classes), 0.01)
    wb = init(ks[3], (hidden, nreg), 0.001)
    b6 = jnp.zeros((1, hidden), jnp.float32)
    b7 = jnp.zeros((1, hidden), jnp.float32)
    bp = jnp.zeros((1, num_classes + nreg), jnp.float32)

    wp = jnp.concatenate([wc, wb], axis=1)      # (hidden, C + R) concatenated predictor

    def pad2(a, r, c_):
        return jnp.pad(a, ((0, r - a.shape[0]), (0, c_ - a.shape[1])))

    return {
        "w6": pad2(w6, d_in_p, h_p).astype(jnp.bfloat16),
        "b6": pad2(b6, 1, h_p),
        "w7": pad2(w7, h_p, h_p).astype(jnp.bfloat16),
        "b7": pad2(b7, 1, h_p),
        "wp": pad2(wp, h_p, p_p).astype(jnp.bfloat16),
        "bp": pad2(bp, 1, p_p),
    }


# -----------------------------------------------------------------------------
# ROIBoxHead forward (inference: TEST.CASCADE=False, IOU_BRANCH=False)
# -----------------------------------------------------------------------------
@functools.partial(jax.jit, static_argnames=(
    "resolution", "spatial_scale", "sampling_ratio", "hidden", "num_classes"))
def roi_box_head_forward(features, proposals, params, *,
                         resolution, spatial_scale, sampling_ratio,
                         hidden, num_classes):
    """features: (C, H, W); proposals: (N, 4). Returns (x, proposals, {}, logits, box_reg)."""
    pooled = roi_align(features, proposals, resolution, spatial_scale,
                       sampling_ratio)                       # (N, C, P, P)
    n = pooled.shape[0]
    pooled_flat = pooled.reshape(n, -1)                      # (N, C*P*P)

    feat, pred = box_head_mlp(pooled_flat, params)

    x = feat[:, :hidden]                                     # feature-extractor output
    class_logits = pred[:, :num_classes]
    box_regression = pred[:, num_classes:num_classes + 5 * num_classes]

    # TODO(synk): post_processor (rotated-box decode + rotated NMS) has data-dependent
    # control flow with no clean Pallas equivalent; proposals are passed through and the
    # raw predictor outputs are returned for a host-side post-processor.
    recur_proposals = proposals
    return x, recur_proposals, {}, class_logits, box_regression


if __name__ == "__main__":
    key = jax.random.PRNGKey(0)
    k_feat, k_box, k_par = jax.random.split(key, 3)

    # Small synthetic config
    C, H, W = 16, 16, 16          # feature map channels / spatial
    N_ROIS = 8                    # number of proposals
    RESOLUTION = 4                # POOLER_RESOLUTION
    SPATIAL_SCALE = 1.0           # feature stride scale
    SAMPLING_RATIO = 2            # samples per bin side
    HIDDEN = 32                   # MLP_HEAD_DIM (padded to 128 lanes internally)
    NUM_CLASSES = 6

    features = jax.random.normal(k_feat, (C, H, W), dtype=jnp.float32)

    ctr = jax.random.uniform(k_box, (N_ROIS, 2), minval=4.0, maxval=12.0)
    half = jax.random.uniform(jax.random.fold_in(k_box, 1), (N_ROIS, 2),
                              minval=2.0, maxval=4.0)
    proposals = jnp.concatenate([ctr - half, ctr + half], axis=-1).astype(jnp.float32)

    params = make_params(k_par, C, RESOLUTION, HIDDEN, NUM_CLASSES)

    x, out_proposals, losses, class_logits, box_regression = roi_box_head_forward(
        features, proposals, params,
        resolution=RESOLUTION, spatial_scale=SPATIAL_SCALE,
        sampling_ratio=SAMPLING_RATIO, hidden=HIDDEN, num_classes=NUM_CLASSES)

    jax.block_until_ready((x, out_proposals, class_logits, box_regression))
    assert x.shape == (N_ROIS, HIDDEN)
    assert out_proposals.shape == (N_ROIS, 4)
    assert class_logits.shape == (N_ROIS, NUM_CLASSES)
    assert box_regression.shape == (N_ROIS, 5 * NUM_CLASSES)
    assert losses == {}
    assert bool(jnp.all(jnp.isfinite(x)))
    assert bool(jnp.all(jnp.isfinite(class_logits)))
    assert bool(jnp.all(jnp.isfinite(box_regression)))
    print("KERNEL_OK")
</pallas_src>

<mosaic_0001>
module attributes {stable_mosaic.version = 11 : i64} {
  func.func @_box_head_mlp_kernel(%arg0: i32, %arg1: i32, %arg2: memref<128x256xbf16, #tpu.memory_space<vmem>>, %arg3: memref<256x128xbf16, #tpu.memory_space<vmem>>, %arg4: memref<1x128xf32, #tpu.memory_space<vmem>>, %arg5: memref<128x128xbf16, #tpu.memory_space<vmem>>, %arg6: memref<1x128xf32, #tpu.memory_space<vmem>>, %arg7: memref<128x128xbf16, #tpu.memory_space<vmem>>, %arg8: memref<1x128xf32, #tpu.memory_space<vmem>>, %arg9: memref<128x128xf32, #tpu.memory_space<vmem>>, %arg10: memref<128x128xf32, #tpu.memory_space<vmem>>, %arg11: memref<128x128xf32, #tpu.memory_space<vmem>>) attributes {dimension_semantics = [#tpu.dimension_semantics<parallel>, #tpu.dimension_semantics<arbitrary>], iteration_bounds = array<i64: 1, 1>, scalar_prefetch = 0 : i64, scratch_operands = 1 : i64, tpu.core_type = #tpu.core_type<tc>, window_params = [{transform_indices = @transform_0, window_bounds = array<i64: 128, 256>}, {transform_indices = @transform_1, window_bounds = array<i64: 256, 128>}, {pipeline_mode = #tpu.pipeline_mode<synchronous>, transform_indices = @transform_2, window_bounds = array<i64: 1, 128>}, {pipeline_mode = #tpu.pipeline_mode<synchronous>, transform_indices = @transform_3, window_bounds = array<i64: 128, 128>}, {pipeline_mode = #tpu.pipeline_mode<synchronous>, transform_indices = @transform_4, window_bounds = array<i64: 1, 128>}, {pipeline_mode = #tpu.pipeline_mode<synchronous>, transform_indices = @transform_5, window_bounds = array<i64: 128, 128>}, {pipeline_mode = #tpu.pipeline_mode<synchronous>, transform_indices = @transform_6, window_bounds = array<i64: 1, 128>}, {transform_indices = @transform_7, window_bounds = array<i64: 128, 128>}, {transform_indices = @transform_8, window_bounds = array<i64: 128, 128>}]} {
    %c0_i32 = arith.constant 0 : i32
    %0 = arith.cmpi eq, %arg1, %c0_i32 : i32
    %1 = arith.extui %0 : i1 to i32
    %c0_i32_0 = arith.constant 0 : i32
    %2 = arith.cmpi ne, %1, %c0_i32_0 : i32
    scf.if %2 {
      %c0_10 = arith.constant 0 : index
      %c0_11 = arith.constant 0 : index
      %12 = vector.load %arg4[%c0_10, %c0_11] : memref<1x128xf32, #tpu.memory_space<vmem>>, vector<1x128xf32>
      %13 = vector.shape_cast %12 : vector<1x128xf32> to vector<1x128xf32>
      %14 = vector.broadcast %13 : vector<1x128xf32> to vector<128x128xf32>
      %c0_12 = arith.constant 0 : index
      %c0_13 = arith.constant 0 : index
      %15 = vector.load %arg11[%c0_12, %c0_13] : memref<128x128xf32, #tpu.memory_space<vmem>>, vector<128x128xf32>
      tpu.vector_store %arg11[%c0_12, %c0_13], %14 {strides = array<i32>} : memref<128x128xf32, #tpu.memory_space<vmem>>, vector<128x128xf32>,
    } else {
    }
    %c0 = arith.constant 0 : index
    %c0_1 = arith.constant 0 : index
    %3 = vector.load %arg11[%c0, %c0_1] : memref<128x128xf32, #tpu.memory_space<vmem>>, vector<128x128xf32>
    %c0_2 = arith.constant 0 : index
    %c0_3 = arith.constant 0 : index
    %4 = vector.load %arg2[%c0_2, %c0_3] : memref<128x256xbf16, #tpu.memory_space<vmem>>, vector<128x256xbf16>
    %c0_4 = arith.constant 0 : index
    %c0_5 = arith.constant 0 : index
    %5 = vector.load %arg3[%c0_4, %c0_5] : memref<256x128xbf16, #tpu.memory_space<vmem>>, vector<256x128xbf16>
    %cst = arith.constant dense<0.000000e+00> : vector<128x128xf32>
    %6 = tpu.matmul %4, %5, %cst {dimension_numbers = #tpu.dot_dimension_numbers<[1], [0], [0], [1], [0, 0, 1, 1], [], []>} : vector<128x256xbf16>, vector<256x128xbf16>, vector<128x128xf32> -> vector<128x128xf32>
    %7 = arith.addf %3, %6 : vector<128x128xf32>
    %c0_6 = arith.constant 0 : index
    %c0_7 = arith.constant 0 : index
    %8 = vector.load %arg11[%c0_6, %c0_7] : memref<128x128xf32, #tpu.memory_space<vmem>>, vector<128x128xf32>
    tpu.vector_store %arg11[%c0_6, %c0_7], %7 {strides = array<i32>} : memref<128x128xf32, #tpu.memory_space<vmem>>, vector<128x128xf32>,
    %c0_i32_8 = arith.constant 0 : i32
    %9 = arith.cmpi eq, %arg1, %c0_i32_8 : i32
    %10 = arith.extui %9 : i1 to i32
    %c0_i32_9 = arith.constant 0 : i32
    %11 = arith.cmpi ne, %10, %c0_i32_9 : i32
    scf.if %11 {
      %c0_10 = arith.constant 0 : index
      %c0_11 = arith.constant 0 : index
      %12 = vector.load %arg11[%c0_10, %c0_11] : memref<128x128xf32, #tpu.memory_space<vmem>>, vector<128x128xf32>
      %cst_12 = arith.constant 0.000000e+00 : f32
      %13 = vector.broadcast %cst_12 : f32 to vector<128x128xf32>
      %14 = arith.maximumf %12, %13 : vector<128x128xf32>
      %15 = arith.truncf %14 : vector<128x128xf32> to vector<128x128xbf16>
      %c0_13 = arith.constant 0 : index
      %c0_14 = arith.constant 0 : index
      %16 = vector.load %arg5[%c0_13, %c0_14] : memref<128x128xbf16, #tpu.memory_space<vmem>>, vector<128x128xbf16>
      %cst_15 = arith.constant dense<0.000000e+00> : vector<128x128xf32>
      %17 = tpu.matmul %15, %16, %cst_15 {dimension_numbers = #tpu.dot_dimension_numbers<[1], [0], [0], [1], [0, 0, 1, 1], [], []>} : vector<128x128xbf16>, vector<128x128xbf16>, vector<128x128xf32> -> vector<128x128xf32>
      %c0_16 = arith.constant 0 : index
      %c0_17 = arith.constant 0 : index
      %18 = vector.load %arg6[%c0_16, %c0_17] : memref<1x128xf32, #tpu.memory_space<vmem>>, vector<1x128xf32>
      %19 = vector.broadcast %18 : vector<1x128xf32> to vector<128x128xf32>
      %20 = arith.addf %17, %19 : vector<128x128xf32>
      %cst_18 = arith.constant 0.000000e+00 : f32
      %21 = vector.broadcast %cst_18 : f32 to vector<128x128xf32>
      %22 = arith.maximumf %20, %21 : vector<128x128xf32>
      %c0_19 = arith.constant 0 : index
      %c0_20 = arith.constant 0 : index
      %23 = vector.load %arg9[%c0_19, %c0_20] : memref<128x128xf32, #tpu.memory_space<vmem>>, vector<128x128xf32>
      tpu.vector_store %arg9[%c0_19, %c0_20], %22 {strides = array<i32>} : memref<128x128xf32, #tpu.memory_space<vmem>>, vector<128x128xf32>,
      %24 = arith.truncf %22 : vector<128x128xf32> to vector<128x128xbf16>
      %c0_21 = arith.constant 0 : index
      %c0_22 = arith.constant 0 : index
      %25 = vector.load %arg7[%c0_21, %c0_22] : memref<128x128xbf16, #tpu.memory_space<vmem>>, vector<128x128xbf16>
      %cst_23 = arith.constant dense<0.000000e+00> : vector<128x128xf32>
      %26 = tpu.matmul %24, %25, %cst_23 {dimension_numbers = #tpu.dot_dimension_numbers<[1], [0], [0], [1], [0, 0, 1, 1], [], []>} : vector<128x128xbf16>, vector<128x128xbf16>, vector<128x128xf32> -> vector<128x128xf32>
      %c0_24 = arith.constant 0 : index
      %c0_25 = arith.constant 0 : index
      %27 = vector.load %arg8[%c0_24, %c0_25] : memref<1x128xf32, #tpu.memory_space<vmem>>, vector<1x128xf32>
      %28 = vector.broadcast %27 : vector<1x128xf32> to vector<128x128xf32>
      %29 = arith.addf %26, %28 : vector<128x128xf32>
      %c0_26 = arith.constant 0 : index
      %c0_27 = arith.constant 0 : index
      %30 = vector.load %arg10[%c0_26, %c0_27] : memref<128x128xf32, #tpu.memory_space<vmem>>, vector<128x128xf32>
      tpu.vector_store %arg10[%c0_26, %c0_27], %29 {strides = array<i32>} : memref<128x128xf32, #tpu.memory_space<vmem>>, vector<128x128xf32>,
    } else {
    }
    return
  }
  func.func @transform_0(%arg0: i32, %arg1: i32) -> (i32, i32) {
    %c0_i32 = arith.constant 0 : i32
    return %arg0, %arg1 : i32, i32
  }
  func.func @transform_1(%arg0: i32, %arg1: i32) -> (i32, i32) {
    %c0_i32 = arith.constant 0 : i32
    %c0_i32_0 = arith.constant 0 : i32
    return %arg1, %c0_i32 : i32, i32
  }
  func.func @transform_2(%arg0: i32, %arg1: i32) -> (i32, i32) {
    %c0_i32 = arith.constant 0 : i32
    %c0_i32_0 = arith.constant 0 : i32
    %c0_i32_1 = arith.constant 0 : i32
    return %c0_i32, %c0_i32_0 : i32, i32
  }
  func.func @transform_3(%arg0: i32, %arg1: i32) -> (i32, i32) {
    %c0_i32 = arith.constant 0 : i32
    %c0_i32_0 = arith.constant 0 : i32
    %c0_i32_1 = arith.constant 0 : i32
    return %c0_i32, %c0_i32_0 : i32, i32
  }
  func.func @transform_4(%arg0: i32, %arg1: i32) -> (i32, i32) {
    %c0_i32 = arith.constant 0 : i32
    %c0_i32_0 = arith.constant 0 : i32
    %c0_i32_1 = arith.constant 0 : i32
    return %c0_i32, %c0_i32_0 : i32, i32
  }
  func.func @transform_5(%arg0: i32, %arg1: i32) -> (i32, i32) {
    %c0_i32 = arith.constant 0 : i32
    %c0_i32_0 = arith.constant 0 : i32
    %c0_i32_1 = arith.constant 0 : i32
    return %c0_i32, %c0_i32_0 : i32, i32
  }
  func.func @transform_6(%arg0: i32, %arg1: i32) -> (i32, i32) {
    %c0_i32 = arith.constant 0 : i32
    %c0_i32_0 = arith.constant 0 : i32
    %c0_i32_1 = arith.constant 0 : i32
    return %c0_i32, %c0_i32_0 : i32, i32
  }
  func.func @transform_7(%arg0: i32, %arg1: i32) -> (i32, i32) {
    %c0_i32 = arith.constant 0 : i32
    %c0_i32_0 = arith.constant 0 : i32
    return %arg0, %c0_i32 : i32, i32
  }
  func.func @transform_8(%arg0: i32, %arg1: i32) -> (i32, i32) {
    %c0_i32 = arith.constant 0 : i32
    %c0_i32_0 = arith.constant 0 : i32
    return %arg0, %c0_i32 : i32, i32
  }
}

</mosaic_0001>

<llo_original>
// kernel: roi_box_head_forward.1
$region0: #{roi_box_head_forward.1}
  #allocation0 [shape = 'u32[]', space=smem, size = 0x4, offset = 0x4, fixed_abs, tag = 'smem constant byte address 0x4 - core index']
  #allocation1 [shape = 'u32[144,128]{1,0:T(1,128)}', space=vmem, size = 0x12000, scoped, tag = 'internal scratch']
  #allocation2 [shape = 'f32[128,128]{1,0:T(8,128)}', space=vmem, size = 0x10000, scoped, tag = 'scratch operand']
  %s0 = inlined_call_operand.hbm [shape: bf16[128,256], index: 0, kind: input, shape index: {}]
  %s1 = inlined_call_operand.hbm [shape: bf16[256,128], index: 1, kind: input, shape index: {}]
  %s2 = inlined_call_operand.hbm [shape: f32[1,128], index: 2, kind: input, shape index: {}]
  %s3 = inlined_call_operand.hbm [shape: bf16[128,128], index: 3, kind: input, shape index: {}]
  %s4 = inlined_call_operand.hbm [shape: f32[1,128], index: 4, kind: input, shape index: {}]
  %s5 = inlined_call_operand.hbm [shape: bf16[128,128], index: 5, kind: input, shape index: {}]
  %s6 = inlined_call_operand.hbm [shape: f32[1,128], index: 6, kind: input, shape index: {}]
  %s7 = inlined_call_operand.hbm [shape: f32[128,128], index: 7, kind: output, shape index: {0}]
  %s8 = inlined_call_operand.hbm [shape: f32[128,128], index: 8, kind: output, shape index: {1}]
  %9 = xla_tuple %s7, %s8
  %s10 = sld [smem:[#allocation0]]
  $region82: #{roi_box_head_forward.1} parent=0
    _
  %s12 = ssub.s32 1, %s10
  %s13 = scalar_select 0, %s12, %s10
  $region1: #{roi_box_head_forward.1} parent=0
    #allocation3 [shape = 'u8[65536]{0}', space=vmem, size = 0x10000, scoped, tag = 'input window, operand 0, single buffered']
    #allocation4 [shape = 's32[1]{0}', space=sflag, size = 0x4, scoped, tag = 'scoped memory for roi_box_head_forward.1']
    #allocation5 [shape = 's32[1]{0}', space=sflag, size = 0x4, scoped, tag = 'scoped memory for roi_box_head_forward.1']
    #allocation6 [shape = 'u8[65536]{0}', space=vmem, size = 0x10000, scoped, tag = 'input window, operand 1, single buffered']
    #allocation7 [shape = 's32[1]{0}', space=sflag, size = 0x4, scoped, tag = 'scoped memory for roi_box_head_forward.1']
    #allocation8 [shape = 'u8[512]{0}', space=vmem, size = 0x400, scoped, tag = 'input window, operand 2, single buffered']
    #allocation9 [shape = 'u8[32768]{0}', space=vmem, size = 0x8000, scoped, tag = 'input window, operand 3, single buffered']
    #allocation10 [shape = 's32[1]{0}', space=sflag, size = 0x4, scoped, tag = 'scoped memory for roi_box_head_forward.1']
    #allocation11 [shape = 'u8[512]{0}', space=vmem, size = 0x400, scoped, tag = 'input window, operand 4, single buffered']
    #allocation12 [shape = 'u8[32768]{0}', space=vmem, size = 0x8000, scoped, tag = 'input window, operand 5, single buffered']
    #allocation13 [shape = 's32[1]{0}', space=sflag, size = 0x4, scoped, tag = 'scoped memory for roi_box_head_forward.1']
    #allocation14 [shape = 'u8[512]{0}', space=vmem, size = 0x400, scoped, tag = 'input window, operand 6, single buffered']
    #allocation15 [shape = 'u8[65536]{0}', space=vmem, size = 0x10000, scoped, tag = 'output window, operand 0, single buffered']
    #allocation16 [shape = 'u8[65536]{0}', space=vmem, size = 0x10000, scoped, tag = 'output window, operand 1, single buffered']
    #allocation17 [shape = 's32[1]{0}', space=sflag, size = 0x4, scoped, tag = 'scoped memory for roi_box_head_forward.1']
    %14 = vsyncpa [#allocation4], 0
    %15 = vsyncpa [#allocation7], 0
    %16 = vsyncpa [#allocation10], 0
    %17 = vsyncpa [#allocation13], 0
    %18 = vsyncpa [#allocation5], 0
    %19 = vsyncpa [#allocation17], 0
    // Predicated region
    $region2: #{roi_box_head_forward.1} parent=1 // pred_check
      _
    $region3: #{roi_box_head_forward.1} parent=1 // pred_check_branch
      %21 = sbr.rel (0) target = $region5
    $region4: #{roi_box_head_forward.1} parent=1 // pred_region
      %s23 = ssub.s32 2048, 2048
      %24 = vsyncadd [#allocation4], %s23
      %s25 = sshll.u32 [#allocation3], 4
      %s26 = int_to_ptr.vmem [resolvable:$true] %s25
      %31 = dma.hbm_to_vmem [thread:$0]  %s0, 2048, %s26, [#allocation4], 128, 128, 8
    $region5: #{roi_box_head_forward.1} parent=1 // pred_fallthru
      _
    // Predicated region
    $region6: #{roi_box_head_forward.1} parent=1 // pred_check
      _
    $region7: #{roi_box_head_forward.1} parent=1 // pred_check_branch
      %33 = sbr.rel (0) target = $region9
    $region8: #{roi_box_head_forward.1} parent=1 // pred_region
      %s35 = ssub.s32 2048, 2048
      %36 = vsyncadd [#allocation7], %s35
      %s37 = sshll.u32 [#allocation6], 4
      %s38 = int_to_ptr.vmem [resolvable:$true] %s37
      %43 = dma.hbm_to_vmem [thread:$0]  %s1, 2048, %s38, [#allocation7], 64, 64, 4
    $region9: #{roi_box_head_forward.1} parent=1 // pred_fallthru
      _
    // Predicated region
    $region10: #{roi_box_head_forward.1} parent=1 // pred_check
      _
    $region11: #{roi_box_head_forward.1} parent=1 // pred_check_branch
      %45 = sbr.rel (0) target = $region13
    $region12: #{roi_box_head_forward.1} parent=1 // pred_region
      %s47 = ssub.s32 16, 16
      %48 = vsyncadd [#allocation7], %s47
      %s50 = sshll.u32 [#allocation8], 4
      %s51 = int_to_ptr.vmem [resolvable:$true] %s50
      %53 = dma.hbm_to_vmem [thread:$0]  %s2, 16, %s51, [#allocation7]
    $region13: #{roi_box_head_forward.1} parent=1 // pred_fallthru
      _
    // Predicated region
    $region14: #{roi_box_head_forward.1} parent=1 // pred_check
      _
    $region15: #{roi_box_head_forward.1} parent=1 // pred_check_branch
      %55 = sbr.rel (0) target = $region17
    $region16: #{roi_box_head_forward.1} parent=1 // pred_region
      %s57 = ssub.s32 1024, 1024
      %58 = vsyncadd [#allocation10], %s57
      %s59 = sshll.u32 [#allocation9], 4
      %s60 = int_to_ptr.vmem [resolvable:$true] %s59
      %65 = dma.hbm_to_vmem [thread:$0]  %s3, 1024, %s60, [#allocation10], 64, 64, 4
    $region17: #{roi_box_head_forward.1} parent=1 // pred_fallthru
      _
    // Predicated region
    $region18: #{roi_box_head_forward.1} parent=1 // pred_check
      _
    $region19: #{roi_box_head_forward.1} parent=1 // pred_check_branch
      %67 = sbr.rel (0) target = $region21
    $region20: #{roi_box_head_forward.1} parent=1 // pred_region
      %s69 = ssub.s32 16, 16
      %70 = vsyncadd [#allocation10], %s69
      %s72 = sshll.u32 [#allocation11], 4
      %s73 = int_to_ptr.vmem [resolvable:$true] %s72
      %75 = dma.hbm_to_vmem [thread:$0]  %s4, 16, %s73, [#allocation10]
    $region21: #{roi_box_head_forward.1} parent=1 // pred_fallthru
      _
    // Predicated region
    $region22: #{roi_box_head_forward.1} parent=1 // pred_check
      _
    $region23: #{roi_box_head_forward.1} parent=1 // pred_check_branch
      %77 = sbr.rel (0) target = $region25
    $region24: #{roi_box_head_forward.1} parent=1 // pred_region
      %s79 = ssub.s32 1024, 1024
      %80 = vsyncadd [#allocation13], %s79
      %s81 = sshll.u32 [#allocation12], 4
      %s82 = int_to_ptr.vmem [resolvable:$true] %s81
      %87 = dma.hbm_to_vmem [thread:$0]  %s5, 1024, %s82, [#allocation13], 64, 64, 4
    $region25: #{roi_box_head_forward.1} parent=1 // pred_fallthru
      _
    // Predicated region
    $region26: #{roi_box_head_forward.1} parent=1 // pred_check
      _
    $region27: #{roi_box_head_forward.1} parent=1 // pred_check_branch
      %89 = sbr.rel (0) target = $region29
    $region28: #{roi_box_head_forward.1} parent=1 // pred_region
      %s91 = ssub.s32 16, 16
      %92 = vsyncadd [#allocation13], %s91
      %s94 = sshll.u32 [#allocation14], 4
      %s95 = int_to_ptr.vmem [resolvable:$true] %s94
      %97 = dma.hbm_to_vmem [thread:$0]  %s6, 16, %s95, [#allocation13]
    $region29: #{roi_box_head_forward.1} parent=1 // pred_fallthru
      _
    // Predicated region
    $region30: #{roi_box_head_forward.1} parent=1 // pred_check
      _
    $region31: #{roi_box_head_forward.1} parent=1 // pred_check_branch
      %99 = sbr.rel (0) target = $region33
    $region32: #{roi_box_head_forward.1} parent=1 // pred_region
      %100 = dma.done [#allocation4], 2048
    $region33: #{roi_box_head_forward.1} parent=1 // pred_fallthru
      _
    // Predicated region
    $region34: #{roi_box_head_forward.1} parent=1 // pred_check
      _
    $region35: #{roi_box_head_forward.1} parent=1 // pred_check_branch
      %102 = sbr.rel (0) target = $region37
    $region36: #{roi_box_head_forward.1} parent=1 // pred_region
      %103 = dma.done [#allocation7], 2048
    $region37: #{roi_box_head_forward.1} parent=1 // pred_fallthru
      _
    // Predicated region
    $region38: #{roi_box_head_forward.1} parent=1 // pred_check
      _
    $region39: #{roi_box_head_forward.1} parent=1 // pred_check_branch
      %105 = sbr.rel (0) target = $region41
    $region40: #{roi_box_head_forward.1} parent=1 // pred_region
      %106 = dma.done [#allocation7], 16
    $region41: #{roi_box_head_forward.1} parent=1 // pred_fallthru
      _
    // Predicated region
    $region42: #{roi_box_head_forward.1} parent=1 // pred_check
      _
    $region43: #{roi_box_head_forward.1} parent=1 // pred_check_branch
      %108 = sbr.rel (0) target = $region45
    $region44: #{roi_box_head_forward.1} parent=1 // pred_region
      %109 = dma.done [#allocation10], 1024
    $region45: #{roi_box_head_forward.1} parent=1 // pred_fallthru
      _
    // Predicated region
    $region46: #{roi_box_head_forward.1} parent=1 // pred_check
      _
    $region47: #{roi_box_head_forward.1} parent=1 // pred_check_branch
      %111 = sbr.rel (0) target = $region49
    $region48: #{roi_box_head_forward.1} parent=1 // pred_region
      %112 = dma.done [#allocation10], 16
    $region49: #{roi_box_head_forward.1} parent=1 // pred_fallthru
      _
    // Predicated region
    $region50: #{roi_box_head_forward.1} parent=1 // pred_check
      _
    $region51: #{roi_box_head_forward.1} parent=1 // pred_check_branch
      %114 = sbr.rel (0) target = $region53
    $region52: #{roi_box_head_forward.1} parent=1 // pred_region
      %115 = dma.done [#allocation13], 1024
    $region53: #{roi_box_head_forward.1} parent=1 // pred_fallthru
      _
    // Predicated region
    $region54: #{roi_box_head_forward.1} parent=1 // pred_check
      _
    $region55: #{roi_box_head_forward.1} parent=1 // pred_check_branch
      %117 = sbr.rel (0) target = $region57
    $region56: #{roi_box_head_forward.1} parent=1 // pred_region
      %118 = dma.done [#allocation13], 16
    $region57: #{roi_box_head_forward.1} parent=1 // pred_fallthru
      _
    %p120 = scmp.eq.s32.totalorder 0, 0
    // Predicated region
    $region58: #{roi_box_head_forward.1} parent=1 // pred_check
      %p121 = pneg %p120
    $region59: #{roi_box_head_forward.1} parent=1 // pred_check_branch
      %123 = sbr.rel (%p121) target = $region61
    $region60: #{roi_box_head_forward.1} parent=1 // pred_region
      %v124 = vld [vmem:[#allocation8] sm:$0x1]
      %v126 = vlaneseq
      %v127 = vshrl.u32 %v126, 7
      %v128 = vsub.s32 0, %v127
      %v129 = vrot.slane %v124, %v128
      %131 = vst [vmem:[#allocation2] sm:$0xff] %v129
      %132 = vst [vmem:[#allocation2 + $0x8] sm:$0xff] %v129
      %133 = vst [vmem:[#allocation2 + $0x10] sm:$0xff] %v129
      %134 = vst [vmem:[#allocation2 + $0x18] sm:$0xff] %v129
      %135 = vst [vmem:[#allocation2 + $0x20] sm:$0xff] %v129
      %136 = vst [vmem:[#allocation2 + $0x28] sm:$0xff] %v129
      %137 = vst [vmem:[#allocation2 + $0x30] sm:$0xff] %v129
      %138 = vst [vmem:[#allocation2 + $0x38] sm:$0xff] %v129
      %139 = vst [vmem:[#allocation2 + $0x40] sm:$0xff] %v129
      %140 = vst [vmem:[#allocation2 + $0x48] sm:$0xff] %v129
      %141 = vst [vmem:[#allocation2 + $0x50] sm:$0xff] %v129
      %142 = vst [vmem:[#allocation2 + $0x58] sm:$0xff] %v129
      %143 = vst [vmem:[#allocation2 + $0x60] sm:$0xff] %v129
      %144 = vst [vmem:[#allocation2 + $0x68] sm:$0xff] %v129
      %145 = vst [vmem:[#allocation2 + $0x70] sm:$0xff] %v129
      %146 = vst [vmem:[#allocation2 + $0x78] sm:$0xff] %v129
    $region61: #{roi_box_head_forward.1} parent=1 // pred_fallthru
      _
    %v147 = vld [vmem:[#allocation2] sm:$0xff]
    %v148 = vld [vmem:[#allocation2 + $0x8] sm:$0xff]
    %v149 = vld [vmem:[#allocation2 + $0x10] sm:$0xff]
    %v150 = vld [vmem:[#allocation2 + $0x18] sm:$0xff]
    %v151 = vld [vmem:[#allocation2 + $0x20] sm:$0xff]
    %v152 = vld [vmem:[#allocation2 + $0x28] sm:$0xff]
    %v153 = vld [vmem:[#allocation2 + $0x30] sm:$0xff]
    %v154 = vld [vmem:[#allocation2 + $0x38] sm:$0xff]
    %v155 = vld [vmem:[#allocation2 + $0x40] sm:$0xff]
    %v156 = vld [vmem:[#allocation2 + $0x48] sm:$0xff]
    %v157 = vld [vmem:[#allocation2 + $0x50] sm:$0xff]
    %v158 = vld [vmem:[#allocation2 + $0x58] sm:$0xff]
    %v159 = vld [vmem:[#allocation2 + $0x60] sm:$0xff]
    %v160 = vld [vmem:[#allocation2 + $0x68] sm:$0xff]
    %v161 = vld [vmem:[#allocation2 + $0x70] sm:$0xff]
    %v162 = vld [vmem:[#allocation2 + $0x78] sm:$0xff]
    %v163 = vld [vmem:[#allocation3] sm:$0xff]
    %v164 = vld [vmem:[#allocation3 + $0x8] sm:$0xff]
    %v165 = vld [vmem:[#allocation3 + $0x10] sm:$0xff]
    %v166 = vld [vmem:[#allocation3 + $0x18] sm:$0xff]
    %v167 = vld [vmem:[#allocation3 + $0x20] sm:$0xff]
    %v168 = vld [vmem:[#allocation3 + $0x28] sm:$0xff]
    %v169 = vld [vmem:[#allocation3 + $0x30] sm:$0xff]
    %v170 = vld [vmem:[#allocation3 + $0x38] sm:$0xff]
    %v171 = vld [vmem:[#allocation3 + $0x40] sm:$0xff]
    %v172 = vld [vmem:[#allocation3 + $0x48] sm:$0xff]
    %v173 = vld [vmem:[#allocation3 + $0x50] sm:$0xff]
    %v174 = vld [vmem:[#allocation3 + $0x58] sm:$0xff]
    %v175 = vld [vmem:[#allocation3 + $0x60] sm:$0xff]
    %v176 = vld [vmem:[#allocation3 + $0x68] sm:$0xff]
    %v177 = vld [vmem:[#allocation3 + $0x70] sm:$0xff]
    %v178 = vld [vmem:[#allocation3 + $0x78] sm:$0xff]
    %v179 = vld [vmem:[#allocation6] sm:$0xf]
    %v180 = vld [vmem:[#allocation6 + $0x4] sm:$0xf]
    %v181 = vld [vmem:[#allocation6 + $0x8] sm:$0xf]
    %v182 = vld [vmem:[#allocation6 + $0xc] sm:$0xf]
    %v183 = vld [vmem:[#allocation6 + $0x10] sm:$0xf]
    %v184 = vld [vmem:[#allocation6 + $0x14] sm:$0xf]
    %v185 = vld [vmem:[#allocation6 + $0x18] sm:$0xf]
    %v186 = vld [vmem:[#allocation6 + $0x1c] sm:$0xf]
    %v187 = vld [vmem:[#allocation6 + $0x20] sm:$0xf]
    %v188 = vld [vmem:[#allocation6 + $0x24] sm:$0xf]
    %v189 = vld [vmem:[#allocation6 + $0x28] sm:$0xf]
    %v190 = vld [vmem:[#allocation6 + $0x2c] sm:$0xf]
    %v191 = vld [vmem:[#allocation6 + $0x30] sm:$0xf]
    %v192 = vld [vmem:[#allocation6 + $0x34] sm:$0xf]
    %v193 = vld [vmem:[#allocation6 + $0x38] sm:$0xf]
    %v194 = vld [vmem:[#allocation6 + $0x3c] sm:$0xf]
    %v195 = vld [vmem:[#allocation6 + $0x40] sm:$0xf]
    %v196 = vld [vmem:[#allocation6 + $0x44] sm:$0xf]
    %v197 = vld [vmem:[#allocation6 + $0x48] sm:$0xf]
    %v198 = vld [vmem:[#allocation6 + $0x4c] sm:$0xf]
    %v199 = vld [vmem:[#allocation6 + $0x50] sm:$0xf]
    %v200 = vld [vmem:[#allocation6 + $0x54] sm:$0xf]
    %v201 = vld [vmem:[#allocation6 + $0x58] sm:$0xf]
    %v202 = vld [vmem:[#allocation6 + $0x5c] sm:$0xf]
    %v203 = vld [vmem:[#allocation6 + $0x60] sm:$0xf]
    %v204 = vld [vmem:[#allocation6 + $0x64] sm:$0xf]
    %v205 = vld [vmem:[#allocation6 + $0x68] sm:$0xf]
    %v206 = vld [vmem:[#allocation6 + $0x6c] sm:$0xf]
    %v207 = vld [vmem:[#allocation6 + $0x70] sm:$0xf]
    %v208 = vld [vmem:[#allocation6 + $0x74] sm:$0xf]
    %v209 = vld [vmem:[#allocation6 + $0x78] sm:$0xf]
    %v210 = vld [vmem:[#allocation6 + $0x7c] sm:$0xf]
    %v227 = vunpack.c.l.b16 %v163
    %v228 = vunpack.c.h.b16 %v163
    %v229 = vunpack.c.l.b16 %v164
    %v230 = vunpack.c.h.b16 %v164
    %v231 = vunpack.c.l.b16 %v165
    %v232 = vunpack.c.h.b16 %v165
    %v233 = vunpack.c.l.b16 %v166
    %v234 = vunpack.c.h.b16 %v166
    %v235 = vunpack.c.l.b16 %v167
    %v236 = vunpack.c.h.b16 %v167
    %v237 = vunpack.c.l.b16 %v168
    %v238 = vunpack.c.h.b16 %v168
    %v239 = vunpack.c.l.b16 %v169
    %v240 = vunpack.c.h.b16 %v169
    %v241 = vunpack.c.l.b16 %v170
    %v242 = vunpack.c.h.b16 %v170
    %v243 = vunpack.c.l.b16 %v171
    %v244 = vunpack.c.h.b16 %v171
    %v245 = vunpack.c.l.b16 %v172
    %v246 = vunpack.c.h.b16 %v172
    %v247 = vunpack.c.l.b16 %v173
    %v248 = vunpack.c.h.b16 %v173
    %v249 = vunpack.c.l.b16 %v174
    %v250 = vunpack.c.h.b16 %v174
    %v251 = vunpack.c.l.b16 %v175
    %v252 = vunpack.c.h.b16 %v175
    %v253 = vunpack.c.l.b16 %v176
    %v254 = vunpack.c.h.b16 %v176
    %v255 = vunpack.c.l.b16 %v177
    %v256 = vunpack.c.h.b16 %v177
    %v257 = vunpack.c.l.b16 %v178
    %v258 = vunpack.c.h.b16 %v178
    %v259 = vpack.c.b16 %v229, %v227
    %v260 = vpack.c.b16 %v230, %v228
    %v261 = vpack.c.b16 %v233, %v231
    %v262 = vpack.c.b16 %v234, %v232
    %v263 = vpack.c.b16 %v237, %v235
    %v264 = vpack.c.b16 %v238, %v236
    %v265 = vpack.c.b16 %v241, %v239
    %v266 = vpack.c.b16 %v242, %v240
    %v267 = vpack.c.b16 %v245, %v243
    %v268 = vpack.c.b16 %v246, %v244
    %v269 = vpack.c.b16 %v249, %v247
    %v270 = vpack.c.b16 %v250, %v248
    %v271 = vpack.c.b16 %v253, %v251
    %v272 = vpack.c.b16 %v254, %v252
    %v273 = vpack.c.b16 %v257, %v255
    %v274 = vpack.c.b16 %v258, %v256
    %v323 = vunpack.c.l.b16 %v179
    %v324 = vunpack.c.l.b16 %v180
    %v325 = vunpack.c.l.b16 %v181
    %v326 = vunpack.c.l.b16 %v182
    %v327 = vunpack.c.l.b16 %v183
    %v328 = vunpack.c.l.b16 %v184
    %v329 = vunpack.c.l.b16 %v185
    %v330 = vunpack.c.l.b16 %v186
    %v331 = vunpack.c.l.b16 %v187
    %v332 = vunpack.c.l.b16 %v188
    %v333 = vunpack.c.l.b16 %v189
    %v334 = vunpack.c.l.b16 %v190
    %v335 = vunpack.c.l.b16 %v191
    %v336 = vunpack.c.l.b16 %v192
    %v337 = vunpack.c.l.b16 %v193
    %v338 = vunpack.c.l.b16 %v194
    %v339 = vunpack.c.l.b16 %v195
    %v340 = vunpack.c.l.b16 %v196
    %v341 = vunpack.c.l.b16 %v197
    %v342 = vunpack.c.l.b16 %v198
    %v343 = vunpack.c.l.b16 %v199
    %v344 = vunpack.c.l.b16 %v200
    %v345 = vunpack.c.l.b16 %v201
    %v346 = vunpack.c.l.b16 %v202
    %v347 = vunpack.c.l.b16 %v203
    %v348 = vunpack.c.l.b16 %v204
    %v349 = vunpack.c.l.b16 %v205
    %v350 = vunpack.c.l.b16 %v206
    %v351 = vunpack.c.l.b16 %v207
    %v352 = vunpack.c.l.b16 %v208
    %v353 = vunpack.c.l.b16 %v209
    %v354 = vunpack.c.l.b16 %v210
    %v355 = vpack.c.b16 %v324, %v323
    %v356 = vpack.c.b16 %v326, %v325
    %v357 = vpack.c.b16 %v328, %v327
    %v358 = vpack.c.b16 %v330, %v329
    %v359 = vpack.c.b16 %v332, %v331
    %v360 = vpack.c.b16 %v334, %v333
    %v361 = vpack.c.b16 %v336, %v335
    %v362 = vpack.c.b16 %v338, %v337
    %v363 = vpack.c.b16 %v340, %v339
    %v364 = vpack.c.b16 %v342, %v341
    %v365 = vpack.c.b16 %v344, %v343
    %v366 = vpack.c.b16 %v346, %v345
    %v367 = vpack.c.b16 %v348, %v347
    %v368 = vpack.c.b16 %v350, %v349
    %v369 = vpack.c.b16 %v352, %v351
    %v370 = vpack.c.b16 %v354, %v353
    %387 = vmatprep.subr.bf16.mxu0 0
    %388 = vmatpush1.bf16.msra.mxu0 %v355
    %389 = vmatprep.subr.bf16.mxu0 0
    %390 = vmatpush1.bf16.msra.mxu0 %v356
    %391 = vmatprep.subr.bf16.mxu0 0
    %392 = vmatpush1.bf16.msra.mxu0 %v357
    %393 = vmatprep.subr.bf16.mxu0 0
    %394 = vmatpush1.bf16.msra.mxu0 %v358
    %395 = vmatprep.subr.bf16.mxu0 0
    %396 = vmatpush1.bf16.msra.mxu0 %v359
    %397 = vmatprep.subr.bf16.mxu0 0
    %398 = vmatpush1.bf16.msra.mxu0 %v360
    %399 = vmatprep.subr.bf16.mxu0 0
    %400 = vmatpush1.bf16.msra.mxu0 %v361
    %401 = vmatprep.subr.bf16.mxu0 0
    %402 = vmatpush1.bf16.msra.mxu0 %v362
    %403 = vmatprep.subr.bf16.mxu0 0
    %404 = vmatpush1.bf16.msra.mxu0 %v363
    %405 = vmatprep.subr.bf16.mxu0 0
    %406 = vmatpush1.bf16.msra.mxu0 %v364
    %407 = vmatprep.subr.bf16.mxu0 0
    %408 = vmatpush1.bf16.msra.mxu0 %v365
    %409 = vmatprep.subr.bf16.mxu0 0
    %410 = vmatpush1.bf16.msra.mxu0 %v366
    %411 = vmatprep.subr.bf16.mxu0 0
    %412 = vmatpush1.bf16.msra.mxu0 %v367
    %413 = vmatprep.subr.bf16.mxu0 0
    %414 = vmatpush1.bf16.msra.mxu0 %v368
    %415 = vmatprep.subr.bf16.mxu0 0
    %416 = vmatpush1.bf16.msra.mxu0 %v369
    %417 = vmatprep.subr.bf16.mxu0 0
    %418 = vmatpush1.bf16.msra.mxu0 %v370
    %419 = vmatprep.mubr.bf16.mxu0 %v260
    %420 = vmatmul.mubr.bf16.gmra.mrb[0].mxu0 %v259
    %v421 = vpop.f32.mrb[0].mxu0
    %v422 = vadd.f32 0.0, %v421
    %v423 = vpop.f32.mrb[0].mxu0
    %v424 = vpop.f32.mrb[0].mxu0
    %v425 = vadd.f32 0.0, %v424
    %v426 = vpop.f32.mrb[0].mxu0
    %427 = vmatprep.mubr.bf16.mxu0 %v262
    %428 = vmatmul.mubr.bf16.gmra.mrb[0].mxu0 %v261
    %v429 = vpop.f32.mrb[0].mxu0
    %v430 = vadd.f32 0.0, %v429
    %v431 = vpop.f32.mrb[0].mxu0
    %v432 = vpop.f32.mrb[0].mxu0
    %v433 = vadd.f32 0.0, %v432
    %v434 = vpop.f32.mrb[0].mxu0
    %435 = vmatprep.mubr.bf16.mxu0 %v264
    %436 = vmatmul.mubr.bf16.gmra.mrb[0].mxu0 %v263
    %v437 = vpop.f32.mrb[0].mxu0
    %v438 = vadd.f32 0.0, %v437
    %v439 = vpop.f32.mrb[0].mxu0
    %v440 = vpop.f32.mrb[0].mxu0
    %v441 = vadd.f32 0.0, %v440
    %v442 = vpop.f32.mrb[0].mxu0
    %443 = vmatprep.mubr.bf16.mxu0 %v266
    %444 = vmatmul.mubr.bf16.gmra.mrb[0].mxu0 %v265
    %v445 = vpop.f32.mrb[0].mxu0
    %v446 = vadd.f32 0.0, %v445
    %v447 = vpop.f32.mrb[0].mxu0
    %v448 = vpop.f32.mrb[0].mxu0
    %v449 = vadd.f32 0.0, %v448
    %v450 = vpop.f32.mrb[0].mxu0
    %451 = vmatprep.mubr.bf16.mxu0 %v268
    %452 = vmatmul.mubr.bf16.gmra.mrb[0].mxu0 %v267
    %v453 = vpop.f32.mrb[0].mxu0
    %v454 = vadd.f32 0.0, %v453
    %v455 = vpop.f32.mrb[0].mxu0
    %v456 = vpop.f32.mrb[0].mxu0
    %v457 = vadd.f32 0.0, %v456
    %v458 = vpop.f32.mrb[0].mxu0
    %459 = vmatprep.mubr.bf16.mxu0 %v270
    %460 = vmatmul.mubr.bf16.gmra.mrb[0].mxu0 %v269
    %v461 = vpop.f32.mrb[0].mxu0
    %v462 = vadd.f32 0.0, %v461
    %v463 = vpop.f32.mrb[0].mxu0
    %v464 = vpop.f32.mrb[0].mxu0
    %v465 = vadd.f32 0.0, %v464
    %v466 = vpop.f32.mrb[0].mxu0
    %467 = vmatprep.mubr.bf16.mxu0 %v272
    %468 = vmatmul.mubr.bf16.gmra.mrb[0].mxu0 %v271
    %v469 = vpop.f32.mrb[0].mxu0
    %v470 = vadd.f32 0.0, %v469
    %v471 = vpop.f32.mrb[0].mxu0
    %v472 = vpop.f32.mrb[0].mxu0
    %v473 = vadd.f32 0.0, %v472
    %v474 = vpop.f32.mrb[0].mxu0
    %475 = vmatprep.mubr.bf16.mxu0 %v274
    %476 = vmatmul.mubr.bf16.gmra.mrb[0].mxu0 %v273
    %v477 = vpop.f32.mrb[0].mxu0
    %v478 = vadd.f32 0.0, %v477
    %v479 = vpop.f32.mrb[0].mxu0
    %v480 = vpop.f32.mrb[0].mxu0
    %v481 = vadd.f32 0.0, %v480
    %v482 = vpop.f32.mrb[0].mxu0
    %483 = vdwg.mxu0
    %v484 = vadd.f32 %v147, %v422
    %v485 = vadd.f32 %v148, %v425
    %v486 = vadd.f32 %v149, %v430
    %v487 = vadd.f32 %v150, %v433
    %v488 = vadd.f32 %v151, %v438
    %v489 = vadd.f32 %v152, %v441
    %v490 = vadd.f32 %v153, %v446
    %v491 = vadd.f32 %v154, %v449
    %v492 = vadd.f32 %v155, %v454
    %v493 = vadd.f32 %v156, %v457
    %v494 = vadd.f32 %v157, %v462
    %v495 = vadd.f32 %v158, %v465
    %v496 = vadd.f32 %v159, %v470
    %v497 = vadd.f32 %v160, %v473
    %v498 = vadd.f32 %v161, %v478
    %v499 = vadd.f32 %v162, %v481
    %500 = vst [vmem:[#allocation2] sm:$0xff] %v484
    %501 = vst [vmem:[#allocation2 + $0x8] sm:$0xff] %v485
    %502 = vst [vmem:[#allocation2 + $0x10] sm:$0xff] %v486
    %503 = vst [vmem:[#allocation2 + $0x18] sm:$0xff] %v487
    %504 = vst [vmem:[#allocation2 + $0x20] sm:$0xff] %v488
    %505 = vst [vmem:[#allocation2 + $0x28] sm:$0xff] %v489
    %506 = vst [vmem:[#allocation2 + $0x30] sm:$0xff] %v490
    %507 = vst [vmem:[#allocation2 + $0x38] sm:$0xff] %v491
    %508 = vst [vmem:[#allocation2 + $0x40] sm:$0xff] %v492
    %509 = vst [vmem:[#allocation2 + $0x48] sm:$0xff] %v493
    %510 = vst [vmem:[#allocation2 + $0x50] sm:$0xff] %v494
    %511 = vst [vmem:[#allocation2 + $0x58] sm:$0xff] %v495
    %512 = vst [vmem:[#allocation2 + $0x60] sm:$0xff] %v496
    %513 = vst [vmem:[#allocation2 + $0x68] sm:$0xff] %v497
    %514 = vst [vmem:[#allocation2 + $0x70] sm:$0xff] %v498
    %515 = vst [vmem:[#allocation2 + $0x78] sm:$0xff] %v499
    // Predicated region
    $region62: #{roi_box_head_forward.1} parent=1 // pred_check
      %p516 = pneg %p120
    $region63: #{roi_box_head_forward.1} parent=1 // pred_check_branch
      %518 = sbr.rel (%p516) target = $region65
    $region64: #{roi_box_head_forward.1} parent=1 // pred_region
      %v519 = vld [vmem:[#allocation2] sm:$0xff]
      %v520 = vld [vmem:[#allocation2 + $0x8] sm:$0xff]
      %v521 = vld [vmem:[#allocation2 + $0x10] sm:$0xff]
      %v522 = vld [vmem:[#allocation2 + $0x18] sm:$0xff]
      %v523 = vld [vmem:[#allocation2 + $0x20] sm:$0xff]
      %v524 = vld [vmem:[#allocation2 + $0x28] sm:$0xff]
      %v525 = vld [vmem:[#allocation2 + $0x30] sm:$0xff]
      %v526 = vld [vmem:[#allocation2 + $0x38] sm:$0xff]
      %v527 = vld [vmem:[#allocation2 + $0x40] sm:$0xff]
      %v528 = vld [vmem:[#allocation2 + $0x48] sm:$0xff]
      %v529 = vld [vmem:[#allocation2 + $0x50] sm:$0xff]
      %v530 = vld [vmem:[#allocation2 + $0x58] sm:$0xff]
      %v531 = vld [vmem:[#allocation2 + $0x60] sm:$0xff]
      %v532 = vld [vmem:[#allocation2 + $0x68] sm:$0xff]
      %v533 = vld [vmem:[#allocation2 + $0x70] sm:$0xff]
      %v534 = vld [vmem:[#allocation2 + $0x78] sm:$0xff]
      %v535 = vmax.f32 %v519, 0.0
      %v536 = vmax.f32 %v520, 0.0
      %v537 = vmax.f32 %v521, 0.0
      %v538 = vmax.f32 %v522, 0.0
      %v539 = vmax.f32 %v523, 0.0
      %v540 = vmax.f32 %v524, 0.0
      %v541 = vmax.f32 %v525, 0.0
      %v542 = vmax.f32 %v526, 0.0
      %v543 = vmax.f32 %v527, 0.0
      %v544 = vmax.f32 %v528, 0.0
      %v545 = vmax.f32 %v529, 0.0
      %v546 = vmax.f32 %v530, 0.0
      %v547 = vmax.f32 %v531, 0.0
      %v548 = vmax.f32 %v532, 0.0
      %v549 = vmax.f32 %v533, 0.0
      %v550 = vmax.f32 %v534, 0.0
      %v551 = vpack.c.bf16 %v536, %v535
      %v552 = vpack.c.bf16 %v538, %v537
      %v553 = vpack.c.bf16 %v540, %v539
      %v554 = vpack.c.bf16 %v542, %v541
      %v555 = vpack.c.bf16 %v544, %v543
      %v556 = vpack.c.bf16 %v546, %v545
      %v557 = vpack.c.bf16 %v548, %v547
      %v558 = vpack.c.bf16 %v550, %v549
      %v559 = vld [vmem:[#allocation9] sm:$0xf]
      %v560 = vld [vmem:[#allocation9 + $0x4] sm:$0xf]
      %v561 = vld [vmem:[#allocation9 + $0x8] sm:$0xf]
      %v562 = vld [vmem:[#allocation9 + $0xc] sm:$0xf]
      %v563 = vld [vmem:[#allocation9 + $0x10] sm:$0xf]
      %v564 = vld [vmem:[#allocation9 + $0x14] sm:$0xf]
      %v565 = vld [vmem:[#allocation9 + $0x18] sm:$0xf]
      %v566 = vld [vmem:[#allocation9 + $0x1c] sm:$0xf]
      %v567 = vld [vmem:[#allocation9 + $0x20] sm:$0xf]
      %v568 = vld [vmem:[#allocation9 + $0x24] sm:$0xf]
      %v569 = vld [vmem:[#allocation9 + $0x28] sm:$0xf]
      %v570 = vld [vmem:[#allocation9 + $0x2c] sm:$0xf]
      %v571 = vld [vmem:[#allocation9 + $0x30] sm:$0xf]
      %v572 = vld [vmem:[#allocation9 + $0x34] sm:$0xf]
      %v573 = vld [vmem:[#allocation9 + $0x38] sm:$0xf]
      %v574 = vld [vmem:[#allocation9 + $0x3c] sm:$0xf]
      %v575 = vld [vmem:[#allocation11] sm:$0x1]
      %v577 = vlaneseq
      %v578 = vshrl.u32 %v577, 7
      %v579 = vsub.s32 0, %v578
      %v580 = vrot.slane %v575, %v579
      %v598 = vunpack.c.l.b16 %v559
      %v599 = vunpack.c.l.b16 %v560
      %v600 = vunpack.c.l.b16 %v561
      %v601 = vunpack.c.l.b16 %v562
      %v602 = vunpack.c.l.b16 %v563
      %v603 = vunpack.c.l.b16 %v564
      %v604 = vunpack.c.l.b16 %v565
      %v605 = vunpack.c.l.b16 %v566
      %v606 = vunpack.c.l.b16 %v567
      %v607 = vunpack.c.l.b16 %v568
      %v608 = vunpack.c.l.b16 %v569
      %v609 = vunpack.c.l.b16 %v570
      %v610 = vunpack.c.l.b16 %v571
      %v611 = vunpack.c.l.b16 %v572
      %v612 = vunpack.c.l.b16 %v573
      %v613 = vunpack.c.l.b16 %v574
      %v614 = vpack.c.b16 %v599, %v598
      %v615 = vpack.c.b16 %v601, %v600
      %v616 = vpack.c.b16 %v603, %v602
      %v617 = vpack.c.b16 %v605, %v604
      %v618 = vpack.c.b16 %v607, %v606
      %v619 = vpack.c.b16 %v609, %v608
      %v620 = vpack.c.b16 %v611, %v610
      %v621 = vpack.c.b16 %v613, %v612
      %630 = vmatprep.subr.bf16.mxu0 0
      %631 = vmatpush1.bf16.msra.mxu0 %v614
      %632 = vmatprep.subr.bf16.mxu0 0
      %633 = vmatpush1.bf16.msra.mxu0 %v615
      %634 = vmatprep.subr.bf16.mxu0 0
      %635 = vmatpush1.bf16.msra.mxu0 %v616
      %636 = vmatprep.subr.bf16.mxu0 0
      %637 = vmatpush1.bf16.msra.mxu0 %v617
      %638 = vmatprep.subr.bf16.mxu0 0
      %639 = vmatpush1.bf16.msra.mxu0 %v618
      %640 = vmatprep.subr.bf16.mxu0 0
      %641 = vmatpush1.bf16.msra.mxu0 %v619
      %642 = vmatprep.subr.bf16.mxu0 0
      %643 = vmatpush1.bf16.msra.mxu0 %v620
      %644 = vmatprep.subr.bf16.mxu0 0
      %645 = vmatpush1.bf16.msra.mxu0 %v621
      %646 = vmatprep.subr.bf16.mxu0 0
      %647 = vmatpush1.bf16.msra.mxu0 0
      %648 = vmatprep.subr.bf16.mxu0 0
      %649 = vmatpush1.bf16.msra.mxu0 0
      %650 = vmatprep.subr.bf16.mxu0 0
      %651 = vmatpush1.bf16.msra.mxu0 0
      %652 = vmatprep.subr.bf16.mxu0 0
      %653 = vmatpush1.bf16.msra.mxu0 0
      %654 = vmatprep.subr.bf16.mxu0 0
      %655 = vmatpush1.bf16.msra.mxu0 0
      %656 = vmatprep.subr.bf16.mxu0 0
      %657 = vmatpush1.bf16.msra.mxu0 0
      %658 = vmatprep.subr.bf16.mxu0 0
      %659 = vmatpush1.bf16.msra.mxu0 0
      %660 = vmatprep.subr.bf16.mxu0 0
      %661 = vmatpush1.bf16.msra.mxu0 0
      %662 = vmatprep.mubr.bf16.mxu0 0
      %663 = vmatmul.mubr.bf16.gmra.mrb[0].mxu0 %v551
      %v664 = vpop.f32.mrb[0].mxu0
      %v665 = vadd.f32 %v580, %v664
      %v666 = vpop.f32.mrb[0].mxu0
      %v667 = vpop.f32.mrb[0].mxu0
      %v668 = vadd.f32 %v580, %v667
      %v669 = vpop.f32.mrb[0].mxu0
      %670 = vmatprep.mubr.bf16.mxu0 0
      %671 = vmatmul.mubr.bf16.gmra.mrb[0].mxu0 %v552
      %v672 = vpop.f32.mrb[0].mxu0
      %v673 = vadd.f32 %v580, %v672
      %v674 = vpop.f32.mrb[0].mxu0
      %v675 = vpop.f32.mrb[0].mxu0
      %v676 = vadd.f32 %v580, %v675
      %v677 = vpop.f32.mrb[0].mxu0
      %678 = vmatprep.mubr.bf16.mxu0 0
      %679 = vmatmul.mubr.bf16.gmra.mrb[0].mxu0 %v553
      %v680 = vpop.f32.mrb[0].mxu0
      %v681 = vadd.f32 %v580, %v680
      %v682 = vpop.f32.mrb[0].mxu0
      %v683 = vpop.f32.mrb[0].mxu0
      %v684 = vadd.f32 %v580, %v683
      %v685 = vpop.f32.mrb[0].mxu0
      %686 = vmatprep.mubr.bf16.mxu0 0
      %687 = vmatmul.mubr.bf16.gmra.mrb[0].mxu0 %v554
      %v688 = vpop.f32.mrb[0].mxu0
      %v689 = vadd.f32 %v580, %v688
      %v690 = vpop.f32.mrb[0].mxu0
      %v691 = vpop.f32.mrb[0].mxu0
      %v692 = vadd.f32 %v580, %v691
      %v693 = vpop.f32.mrb[0].mxu0
      %694 = vmatprep.mubr.bf16.mxu0 0
      %695 = vmatmul.mubr.bf16.gmra.mrb[0].mxu0 %v555
      %v696 = vpop.f32.mrb[0].mxu0
      %v697 = vadd.f32 %v580, %v696
      %v698 = vpop.f32.mrb[0].mxu0
      %v699 = vpop.f32.mrb[0].mxu0
      %v700 = vadd.f32 %v580, %v699
      %v701 = vpop.f32.mrb[0].mxu0
      %702 = vmatprep.mubr.bf16.mxu0 0
      %703 = vmatmul.mubr.bf16.gmra.mrb[0].mxu0 %v556
      %v704 = vpop.f32.mrb[0].mxu0
      %v705 = vadd.f32 %v580, %v704
      %v706 = vpop.f32.mrb[0].mxu0
      %v707 = vpop.f32.mrb[0].mxu0
      %v708 = vadd.f32 %v580, %v707
      %v709 = vpop.f32.mrb[0].mxu0
      %710 = vmatprep.mubr.bf16.mxu0 0
      %711 = vmatmul.mubr.bf16.gmra.mrb[0].mxu0 %v557
      %v712 = vpop.f32.mrb[0].mxu0
      %v713 = vadd.f32 %v580, %v712
      %v714 = vpop.f32.mrb[0].mxu0
      %v715 = vpop.f32.mrb[0].mxu0
      %v716 = vadd.f32 %v580, %v715
      %v717 = vpop.f32.mrb[0].mxu0
      %718 = vmatprep.mubr.bf16.mxu0 0
      %719 = vmatmul.mubr.bf16.gmra.mrb[0].mxu0 %v558
      %v720 = vpop.f32.mrb[0].mxu0
      %v721 = vadd.f32 %v580, %v720
      %v722 = vpop.f32.mrb[0].mxu0
      %v723 = vpop.f32.mrb[0].mxu0
      %v724 = vadd.f32 %v580, %v723
      %v725 = vpop.f32.mrb[0].mxu0
      %726 = vdwg.mxu0
      %v727 = vmax.f32 %v665, 0.0
      %v728 = vmax.f32 %v668, 0.0
      %v729 = vmax.f32 %v673, 0.0
      %v730 = vmax.f32 %v676, 0.0
      %v731 = vmax.f32 %v681, 0.0
      %v732 = vmax.f32 %v684, 0.0
      %v733 = vmax.f32 %v689, 0.0
      %v734 = vmax.f32 %v692, 0.0
      %v735 = vmax.f32 %v697, 0.0
      %v736 = vmax.f32 %v700, 0.0
      %v737 = vmax.f32 %v705, 0.0
      %v738 = vmax.f32 %v708, 0.0
      %v739 = vmax.f32 %v713, 0.0
      %v740 = vmax.f32 %v716, 0.0
      %v741 = vmax.f32 %v721, 0.0
      %v742 = vmax.f32 %v724, 0.0
      %743 = vst [vmem:[#allocation15] sm:$0xff] %v727
      %744 = vst [vmem:[#allocation15 + $0x8] sm:$0xff] %v728
      %745 = vst [vmem:[#allocation15 + $0x10] sm:$0xff] %v729
      %746 = vst [vmem:[#allocation15 + $0x18] sm:$0xff] %v730
      %747 = vst [vmem:[#allocation15 + $0x20] sm:$0xff] %v731
      %748 = vst [vmem:[#allocation15 + $0x28] sm:$0xff] %v732
      %749 = vst [vmem:[#allocation15 + $0x30] sm:$0xff] %v733
      %750 = vst [vmem:[#allocation15 + $0x38] sm:$0xff] %v734
      %751 = vst [vmem:[#allocation15 + $0x40] sm:$0xff] %v735
      %752 = vst [vmem:[#allocation15 + $0x48] sm:$0xff] %v736
      %753 = vst [vmem:[#allocation15 + $0x50] sm:$0xff] %v737
      %754 = vst [vmem:[#allocation15 + $0x58] sm:$0xff] %v738
      %755 = vst [vmem:[#allocation15 + $0x60] sm:$0xff] %v739
      %756 = vst [vmem:[#allocation15 + $0x68] sm:$0xff] %v740
      %757 = vst [vmem:[#allocation15 + $0x70] sm:$0xff] %v741
      %758 = vst [vmem:[#allocation15 + $0x78] sm:$0xff] %v742
      %v759 = vpack.c.bf16 %v728, %v727
      %v760 = vpack.c.bf16 %v730, %v729
      %v761 = vpack.c.bf16 %v732, %v731
      %v762 = vpack.c.bf16 %v734, %v733
      %v763 = vpack.c.bf16 %v736, %v735
      %v764 = vpack.c.bf16 %v738, %v737
      %v765 = vpack.c.bf16 %v740, %v739
      %v766 = vpack.c.bf16 %v742, %v741
      %v767 = vld [vmem:[#allocation12] sm:$0xf]
      %v768 = vld [vmem:[#allocation12 + $0x4] sm:$0xf]
      %v769 = vld [vmem:[#allocation12 + $0x8] sm:$0xf]
      %v770 = vld [vmem:[#allocation12 + $0xc] sm:$0xf]
      %v771 = vld [vmem:[#allocation12 + $0x10] sm:$0xf]
      %v772 = vld [vmem:[#allocation12 + $0x14] sm:$0xf]
      %v773 = vld [vmem:[#allocation12 + $0x18] sm:$0xf]
      %v774 = vld [vmem:[#allocation12 + $0x1c] sm:$0xf]
      %v775 = vld [vmem:[#allocation12 + $0x20] sm:$0xf]
      %v776 = vld [vmem:[#allocation12 + $0x24] sm:$0xf]
      %v777 = vld [vmem:[#allocation12 + $0x28] sm:$0xf]
      %v778 = vld [vmem:[#allocation12 + $0x2c] sm:$0xf]
      %v779 = vld [vmem:[#allocation12 + $0x30] sm:$0xf]
      %v780 = vld [vmem:[#allocation12 + $0x34] sm:$0xf]
      %v781 = vld [vmem:[#allocation12 + $0x38] sm:$0xf]
      %v782 = vld [vmem:[#allocation12 + $0x3c] sm:$0xf]
      %v783 = vld [vmem:[#allocation14] sm:$0x1]
      %v785 = vlaneseq
      %v786 = vshrl.u32 %v785, 7
      %v787 = vsub.s32 0, %v786
      %v788 = vrot.slane %v783, %v787
      %v806 = vunpack.c.l.b16 %v767
      %v807 = vunpack.c.l.b16 %v768
      %v808 = vunpack.c.l.b16 %v769
      %v809 = vunpack.c.l.b16 %v770
      %v810 = vunpack.c.l.b16 %v771
      %v811 = vunpack.c.l.b16 %v772
      %v812 = vunpack.c.l.b16 %v773
      %v813 = vunpack.c.l.b16 %v774
      %v814 = vunpack.c.l.b16 %v775
      %v815 = vunpack.c.l.b16 %v776
      %v816 = vunpack.c.l.b16 %v777
      %v817 = vunpack.c.l.b16 %v778
      %v818 = vunpack.c.l.b16 %v779
      %v819 = vunpack.c.l.b16 %v780
      %v820 = vunpack.c.l.b16 %v781
      %v821 = vunpack.c.l.b16 %v782
      %v822 = vpack.c.b16 %v807, %v806
      %v823 = vpack.c.b16 %v809, %v808
      %v824 = vpack.c.b16 %v811, %v810
      %v825 = vpack.c.b16 %v813, %v812
      %v826 = vpack.c.b16 %v815, %v814
      %v827 = vpack.c.b16 %v817, %v816
      %v828 = vpack.c.b16 %v819, %v818
      %v829 = vpack.c.b16 %v821, %v820
      %838 = vmatprep.subr.bf16.mxu0 0
      %839 = vmatpush1.bf16.msra.mxu0 %v822
      %840 = vmatprep.subr.bf16.mxu0 0
      %841 = vmatpush1.bf16.msra.mxu0 %v823
      %842 = vmatprep.subr.bf16.mxu0 0
      %843 = vmatpush1.bf16.msra.mxu0 %v824
      %844 = vmatprep.subr.bf16.mxu0 0
      %845 = vmatpush1.bf16.msra.mxu0 %v825
      %846 = vmatprep.subr.bf16.mxu0 0
      %847 = vmatpush1.bf16.msra.mxu0 %v826
      %848 = vmatprep.subr.bf16.mxu0 0
      %849 = vmatpush1.bf16.msra.mxu0 %v827
      %850 = vmatprep.subr.bf16.mxu0 0
      %851 = vmatpush1.bf16.msra.mxu0 %v828
      %852 = vmatprep.subr.bf16.mxu0 0
      %853 = vmatpush1.bf16.msra.mxu0 %v829
      %854 = vmatprep.subr.bf16.mxu0 0
      %855 = vmatpush1.bf16.msra.mxu0 0
      %856 = vmatprep.subr.bf16.mxu0 0
      %857 = vmatpush1.bf16.msra.mxu0 0
      %858 = vmatprep.subr.bf16.mxu0 0
      %859 = vmatpush1.bf16.msra.mxu0 0
      %860 = vmatprep.subr.bf16.mxu0 0
      %861 = vmatpush1.bf16.msra.mxu0 0
      %862 = vmatprep.subr.bf16.mxu0 0
      %863 = vmatpush1.bf16.msra.mxu0 0
      %864 = vmatprep.subr.bf16.mxu0 0
      %865 = vmatpush1.bf16.msra.mxu0 0
      %866 = vmatprep.subr.bf16.mxu0 0
      %867 = vmatpush1.bf16.msra.mxu0 0
      %868 = vmatprep.subr.bf16.mxu0 0
      %869 = vmatpush1.bf16.msra.mxu0 0
      %870 = vmatprep.mubr.bf16.mxu0 0
      %871 = vmatmul.mubr.bf16.gmra.mrb[0].mxu0 %v759
      %v872 = vpop.f32.mrb[0].mxu0
      %v873 = vadd.f32 %v788, %v872
      %v874 = vpop.f32.mrb[0].mxu0
      %v875 = vpop.f32.mrb[0].mxu0
      %v876 = vadd.f32 %v788, %v875
      %v877 = vpop.f32.mrb[0].mxu0
      %878 = vmatprep.mubr.bf16.mxu0 0
      %879 = vmatmul.mubr.bf16.gmra.mrb[0].mxu0 %v760
      %v880 = vpop.f32.mrb[0].mxu0
      %v881 = vadd.f32 %v788, %v880
      %v882 = vpop.f32.mrb[0].mxu0
      %v883 = vpop.f32.mrb[0].mxu0
      %v884 = vadd.f32 %v788, %v883
      %v885 = vpop.f32.mrb[0].mxu0
      %886 = vmatprep.mubr.bf16.mxu0 0
      %887 = vmatmul.mubr.bf16.gmra.mrb[0].mxu0 %v761
      %v888 = vpop.f32.mrb[0].mxu0
      %v889 = vadd.f32 %v788, %v888
      %v890 = vpop.f32.mrb[0].mxu0
      %v891 = vpop.f32.mrb[0].mxu0
      %v892 = vadd.f32 %v788, %v891
      %v893 = vpop.f32.mrb[0].mxu0
      %894 = vmatprep.mubr.bf16.mxu0 0
      %895 = vmatmul.mubr.bf16.gmra.mrb[0].mxu0 %v762
      %v896 = vpop.f32.mrb[0].mxu0
      %v897 = vadd.f32 %v788, %v896
      %v898 = vpop.f32.mrb[0].mxu0
      %v899 = vpop.f32.mrb[0].mxu0
      %v900 = vadd.f32 %v788, %v899
      %v901 = vpop.f32.mrb[0].mxu0
      %902 = vmatprep.mubr.bf16.mxu0 0
      %903 = vmatmul.mubr.bf16.gmra.mrb[0].mxu0 %v763
      %v904 = vpop.f32.mrb[0].mxu0
      %v905 = vadd.f32 %v788, %v904
      %v906 = vpop.f32.mrb[0].mxu0
      %v907 = vpop.f32.mrb[0].mxu0
      %v908 = vadd.f32 %v788, %v907
      %v909 = vpop.f32.mrb[0].mxu0
      %910 = vmatprep.mubr.bf16.mxu0 0
      %911 = vmatmul.mubr.bf16.gmra.mrb[0].mxu0 %v764
      %v912 = vpop.f32.mrb[0].mxu0
      %v913 = vadd.f32 %v788, %v912
      %v914 = vpop.f32.mrb[0].mxu0
      %v915 = vpop.f32.mrb[0].mxu0
      %v916 = vadd.f32 %v788, %v915
      %v917 = vpop.f32.mrb[0].mxu0
      %918 = vmatprep.mubr.bf16.mxu0 0
      %919 = vmatmul.mubr.bf16.gmra.mrb[0].mxu0 %v765
      %v920 = vpop.f32.mrb[0].mxu0
      %v921 = vadd.f32 %v788, %v920
      %v922 = vpop.f32.mrb[0].mxu0
      %v923 = vpop.f32.mrb[0].mxu0
      %v924 = vadd.f32 %v788, %v923
      %v925 = vpop.f32.mrb[0].mxu0
      %926 = vmatprep.mubr.bf16.mxu0 0
      %927 = vmatmul.mubr.bf16.gmra.mrb[0].mxu0 %v766
      %v928 = vpop.f32.mrb[0].mxu0
      %v929 = vadd.f32 %v788, %v928
      %v930 = vpop.f32.mrb[0].mxu0
      %v931 = vpop.f32.mrb[0].mxu0
      %v932 = vadd.f32 %v788, %v931
      %v933 = vpop.f32.mrb[0].mxu0
      %934 = vdwg.mxu0
      %935 = vst [vmem:[#allocation16] sm:$0xff] %v873
      %936 = vst [vmem:[#allocation16 + $0x8] sm:$0xff] %v876
      %937 = vst [vmem:[#allocation16 + $0x10] sm:$0xff] %v881
      %938 = vst [vmem:[#allocation16 + $0x18] sm:$0xff] %v884
      %939 = vst [vmem:[#allocation16 + $0x20] sm:$0xff] %v889
      %940 = vst [vmem:[#allocation16 + $0x28] sm:$0xff] %v892
      %941 = vst [vmem:[#allocation16 + $0x30] sm:$0xff] %v897
      %942 = vst [vmem:[#allocation16 + $0x38] sm:$0xff] %v900
      %943 = vst [vmem:[#allocation16 + $0x40] sm:$0xff] %v905
      %944 = vst [vmem:[#allocation16 + $0x48] sm:$0xff] %v908
      %945 = vst [vmem:[#allocation16 + $0x50] sm:$0xff] %v913
      %946 = vst [vmem:[#allocation16 + $0x58] sm:$0xff] %v916
      %947 = vst [vmem:[#allocation16 + $0x60] sm:$0xff] %v921
      %948 = vst [vmem:[#allocation16 + $0x68] sm:$0xff] %v924
      %949 = vst [vmem:[#allocation16 + $0x70] sm:$0xff] %v929
      %950 = vst [vmem:[#allocation16 + $0x78] sm:$0xff] %v932
    $region65: #{roi_box_head_forward.1} parent=1 // pred_fallthru
      _
    // Predicated region
    $region66: #{roi_box_head_forward.1} parent=1 // pred_check
      _
    $region67: #{roi_box_head_forward.1} parent=1 // pred_check_branch
      %952 = sbr.rel (0) target = $region69
    $region68: #{roi_box_head_forward.1} parent=1 // pred_region
      %s954 = ssub.s32 2048, 2048
      %955 = vsyncadd [#allocation5], %s954
      %s956 = sshll.u32 [#allocation15], 4
      %s957 = int_to_ptr.vmem [resolvable:$true] %s956
      %962 = dma.vmem_to_hbm [thread:$0]  %s957, 2048, %s7, [#allocation5], 128, 128, 8
    $region69: #{roi_box_head_forward.1} parent=1 // pred_fallthru
      _
    // Predicated region
    $region70: #{roi_box_head_forward.1} parent=1 // pred_check
      _
    $region71: #{roi_box_head_forward.1} parent=1 // pred_check_branch
      %964 = sbr.rel (0) target = $region73
    $region72: #{roi_box_head_forward.1} parent=1 // pred_region
      %s966 = ssub.s32 2048, 2048
      %967 = vsyncadd [#allocation17], %s966
      %s968 = sshll.u32 [#allocation16], 4
      %s969 = int_to_ptr.vmem [resolvable:$true] %s968
      %974 = dma.vmem_to_hbm [thread:$0]  %s969, 2048, %s8, [#allocation17], 128, 128, 8
    $region73: #{roi_box_head_forward.1} parent=1 // pred_fallthru
      _
    // Predicated region
    $region74: #{roi_box_head_forward.1} parent=1 // pred_check
      _
    $region75: #{roi_box_head_forward.1} parent=1 // pred_check_branch
      %976 = sbr.rel (0) target = $region77
    $region76: #{roi_box_head_forward.1} parent=1 // pred_region
      %977 = dma.done [#allocation5], 2048
    $region77: #{roi_box_head_forward.1} parent=1 // pred_fallthru
      _
    // Predicated region
    $region78: #{roi_box_head_forward.1} parent=1 // pred_check
      _
    $region79: #{roi_box_head_forward.1} parent=1 // pred_check_branch
      %979 = sbr.rel (0) target = $region81
    $region80: #{roi_box_head_forward.1} parent=1 // pred_region
      %980 = dma.done [#allocation17], 2048
    $region81: #{roi_box_head_forward.1} parent=1 // pred_fallthru
      _
    %981 = vsyncpa [#allocation4], 1
    %982 = vsyncpa [#allocation7], 1
    %983 = vsyncpa [#allocation10], 1
    %984 = vsyncpa [#allocation13], 1
    %985 = vsyncpa [#allocation5], 1
    %986 = vsyncpa [#allocation17], 1

</llo_original>
